<compile_context>
chip_gen: v5e
topology: v5e:2x2
jax: 0.10.0
libtpu: 0.0.40
codegen_flags: <defaults>
</compile_context>

<pallas_src>
import math

import jax
import jax.numpy as jnp
from jax.experimental import pallas as pl
from jax.experimental.pallas import tpu as pltpu


def _ffn_kernel(x_ref, w1_ref, b1_ref, w2_ref, b2_ref, o_ref):
    # x_ref: (TM, D)   w1_ref: (D, H)   b1_ref: (1, H)
    # w2_ref: (H, D)   b2_ref: (1, D)   o_ref: (TM, D)
    h = jnp.dot(x_ref[...], w1_ref[...], preferred_element_type=jnp.float32)
    h = jnp.maximum(h + b1_ref[...], 0.0)           # Linear1 + ReLU (f32 accumulate)
    # Dropout(p=0.0) is the identity in the forward pass.
    y = jnp.dot(h.astype(w2_ref.dtype), w2_ref[...],
                preferred_element_type=jnp.float32)
    o_ref[...] = (y + b2_ref[...]).astype(o_ref.dtype)   # Linear2


def feed_forward(x, w1, b1, w2, b2, *, tm=256):
    """x: (..., embed_dim).  w1: (D, H), b1: (H,), w2: (H, D), b2: (D,)."""
    orig_shape = x.shape
    D = orig_shape[-1]
    H = w1.shape[1]
    assert w1.shape == (D, H) and w2.shape == (H, D)
    assert b1.shape == (H,) and b2.shape == (D,)

    # Flatten all leading dims into one row axis so the grid tiles a single,
    # well-sized dimension instead of one tiny block per batch element.
    M = math.prod(orig_shape[:-1])
    x2 = x.reshape(M, D)
    b1_2 = b1.reshape(1, H)
    b2_2 = b2.reshape(1, D)

    # Row-tile: full M for small inputs, otherwise a multiple-of-8 tile.
    # (tm=256 rows of f32 activations keeps each double-buffered block tiny,
    #  well inside v7x's 64 MiB VMEM as well as v5e/v6e's 128 MiB.)
    tm_eff = M if M <= tm else tm
    Mp = pl.cdiv(M, tm_eff) * tm_eff
    if Mp != M:
        x2 = jnp.pad(x2, ((0, Mp - M), (0, 0)))

    grid = (Mp // tm_eff,)

    out = pl.pallas_call(
        _ffn_kernel,
        out_shape=jax.ShapeDtypeStruct((Mp, D), x.dtype),
        grid_spec=pltpu.PrefetchScalarGridSpec(
            num_scalar_prefetch=0,
            grid=grid,
            in_specs=[
                pl.BlockSpec((tm_eff, D), lambda i: (i, 0)),   # activations: one row-tile per step
                pl.BlockSpec((D, H), lambda i: (0, 0)),        # W1 resident (constant index_map)
                pl.BlockSpec((1, H), lambda i: (0, 0)),        # b1 resident
                pl.BlockSpec((H, D), lambda i: (0, 0)),        # W2 resident
                pl.BlockSpec((1, D), lambda i: (0, 0)),        # b2 resident
            ],
            out_specs=pl.BlockSpec((tm_eff, D), lambda i: (i, 0)),
        ),
        compiler_params=pltpu.CompilerParams(
            dimension_semantics=("parallel",),   # lets v7x shard row-tiles across its 2 TCs
        ),
    )(x2, w1, b1_2, w2, b2_2)

    if Mp != M:
        out = out[:M]
    return out.reshape(orig_shape)


if __name__ == "__main__":
    # Small shapes consistent with the module: batch=2, seq=8, embed_dim=32, latent_dim=64
    B, L, D, H = 2, 8, 32, 64

    key = jax.random.PRNGKey(0)
    kx, k1, k2, k3, k4 = jax.random.split(key, 5)
    x = jax.random.normal(kx, (B, L, D), dtype=jnp.float32)
    # nn.Linear-style init bounds (exact distribution irrelevant for the kernel check)
    w1 = jax.random.uniform(k1, (D, H), minval=-1.0 / math.sqrt(D), maxval=1.0 / math.sqrt(D), dtype=jnp.float32)
    b1 = jax.random.uniform(k2, (H,),   minval=-1.0 / math.sqrt(D), maxval=1.0 / math.sqrt(D), dtype=jnp.float32)
    w2 = jax.random.uniform(k3, (H, D), minval=-1.0 / math.sqrt(H), maxval=1.0 / math.sqrt(H), dtype=jnp.float32)
    b2 = jax.random.uniform(k4, (D,),   minval=-1.0 / math.sqrt(H), maxval=1.0 / math.sqrt(H), dtype=jnp.float32)

    out = feed_forward(x, w1, b1, w2, b2)
    out = jax.block_until_ready(out)

    # reference check (pure JAX)
    ref = (jnp.maximum(x.reshape(-1, D) @ w1 + b1, 0.0) @ w2 + b2).reshape(B, L, D)
    assert out.shape == (B, L, D)
    assert jnp.allclose(out, ref, atol=1e-5, rtol=1e-5), "mismatch vs reference"

    print("KERNEL_OK")
</pallas_src>

<mosaic_0001>
module attributes {stable_mosaic.version = 11 : i64} {
  func.func @_ffn_kernel(%arg0: i32, %arg1: memref<16x32xf32, #tpu.memory_space<vmem>>, %arg2: memref<32x64xf32, #tpu.memory_space<vmem>>, %arg3: memref<1x64xf32, #tpu.memory_space<vmem>>, %arg4: memref<64x32xf32, #tpu.memory_space<vmem>>, %arg5: memref<1x32xf32, #tpu.memory_space<vmem>>, %arg6: memref<16x32xf32, #tpu.memory_space<vmem>>) attributes {dimension_semantics = [#tpu.dimension_semantics<parallel>], iteration_bounds = array<i64: 1>, scalar_prefetch = 0 : i64, scratch_operands = 0 : i64, tpu.core_type = #tpu.core_type<tc>, window_params = [{transform_indices = @transform_0, window_bounds = array<i64: 16, 32>}, {pipeline_mode = #tpu.pipeline_mode<synchronous>, transform_indices = @transform_1, window_bounds = array<i64: 32, 64>}, {pipeline_mode = #tpu.pipeline_mode<synchronous>, transform_indices = @transform_2, window_bounds = array<i64: 1, 64>}, {pipeline_mode = #tpu.pipeline_mode<synchronous>, transform_indices = @transform_3, window_bounds = array<i64: 64, 32>}, {pipeline_mode = #tpu.pipeline_mode<synchronous>, transform_indices = @transform_4, window_bounds = array<i64: 1, 32>}, {transform_indices = @transform_5, window_bounds = array<i64: 16, 32>}]} {
    %c0 = arith.constant 0 : index
    %c0_0 = arith.constant 0 : index
    %0 = vector.load %arg1[%c0, %c0_0] : memref<16x32xf32, #tpu.memory_space<vmem>>, vector<16x32xf32>
    %c0_1 = arith.constant 0 : index
    %c0_2 = arith.constant 0 : index
    %1 = vector.load %arg2[%c0_1, %c0_2] : memref<32x64xf32, #tpu.memory_space<vmem>>, vector<32x64xf32>
    %cst = arith.constant dense<0.000000e+00> : vector<16x64xf32>
    %2 = tpu.matmul %0, %1, %cst {dimension_numbers = #tpu.dot_dimension_numbers<[1], [0], [0], [1], [0, 0, 1, 1], [], []>} : vector<16x32xf32>, vector<32x64xf32>, vector<16x64xf32> -> vector<16x64xf32>
    %c0_3 = arith.constant 0 : index
    %c0_4 = arith.constant 0 : index
    %3 = vector.load %arg3[%c0_3, %c0_4] : memref<1x64xf32, #tpu.memory_space<vmem>>, vector<1x64xf32>
    %4 = vector.broadcast %3 : vector<1x64xf32> to vector<16x64xf32>
    %5 = arith.addf %2, %4 : vector<16x64xf32>
    %cst_5 = arith.constant 0.000000e+00 : f32
    %6 = vector.broadcast %cst_5 : f32 to vector<16x64xf32>
    %7 = arith.maximumf %5, %6 : vector<16x64xf32>
    %c0_6 = arith.constant 0 : index
    %c0_7 = arith.constant 0 : index
    %8 = vector.load %arg4[%c0_6, %c0_7] : memref<64x32xf32, #tpu.memory_space<vmem>>, vector<64x32xf32>
    %cst_8 = arith.constant dense<0.000000e+00> : vector<16x32xf32>
    %9 = tpu.matmul %7, %8, %cst_8 {dimension_numbers = #tpu.dot_dimension_numbers<[1], [0], [0], [1], [0, 0, 1, 1], [], []>} : vector<16x64xf32>, vector<64x32xf32>, vector<16x32xf32> -> vector<16x32xf32>
    %c0_9 = arith.constant 0 : index
    %c0_10 = arith.constant 0 : index
    %10 = vector.load %arg5[%c0_9, %c0_10] : memref<1x32xf32, #tpu.memory_space<vmem>>, vector<1x32xf32>
    %11 = vector.broadcast %10 : vector<1x32xf32> to vector<16x32xf32>
    %12 = arith.addf %9, %11 : vector<16x32xf32>
    %c0_11 = arith.constant 0 : index
    %c0_12 = arith.constant 0 : index
    %13 = vector.load %arg6[%c0_11, %c0_12] : memref<16x32xf32, #tpu.memory_space<vmem>>, vector<16x32xf32>
    tpu.vector_store %arg6[%c0_11, %c0_12], %12 {strides = array<i32>} : memref<16x32xf32, #tpu.memory_space<vmem>>, vector<16x32xf32>,
    return
  }
  func.func @transform_0(%arg0: i32) -> (i32, i32) {
    %c0_i32 = arith.constant 0 : i32
    %c0_i32_0 = arith.constant 0 : i32
    return %arg0, %c0_i32 : i32, i32
  }
  func.func @transform_1(%arg0: i32) -> (i32, i32) {
    %c0_i32 = arith.constant 0 : i32
    %c0_i32_0 = arith.constant 0 : i32
    %c0_i32_1 = arith.constant 0 : i32
    return %c0_i32, %c0_i32_0 : i32, i32
  }
  func.func @transform_2(%arg0: i32) -> (i32, i32) {
    %c0_i32 = arith.constant 0 : i32
    %c0_i32_0 = arith.constant 0 : i32
    %c0_i32_1 = arith.constant 0 : i32
    return %c0_i32, %c0_i32_0 : i32, i32
  }
  func.func @transform_3(%arg0: i32) -> (i32, i32) {
    %c0_i32 = arith.constant 0 : i32
    %c0_i32_0 = arith.constant 0 : i32
    %c0_i32_1 = arith.constant 0 : i32
    return %c0_i32, %c0_i32_0 : i32, i32
  }
  func.func @transform_4(%arg0: i32) -> (i32, i32) {
    %c0_i32 = arith.constant 0 : i32
    %c0_i32_0 = arith.constant 0 : i32
    %c0_i32_1 = arith.constant 0 : i32
    return %c0_i32, %c0_i32_0 : i32, i32
  }
  func.func @transform_5(%arg0: i32) -> (i32, i32) {
    %c0_i32 = arith.constant 0 : i32
    %c0_i32_0 = arith.constant 0 : i32
    return %arg0, %c0_i32 : i32, i32
  }
}

</mosaic_0001>

<llo_original>
// kernel: tpu_custom_call.1
$region0: #{tpu_custom_call.1}
  #allocation0 [shape = 'u32[]', space=smem, size = 0x4, offset = 0x4, fixed_abs, tag = 'smem constant byte address 0x4 - core index']
  #allocation1 [shape = 'u32[72,128]{1,0:T(1,128)}', space=vmem, size = 0x9000, scoped, tag = 'internal scratch']
  %s0 = inlined_call_operand.vmem [shape: f32[16,32], index: 0, kind: input, shape index: {}]
  %s1 = inlined_call_operand.vmem [shape: f32[32,64], index: 1, kind: input, shape index: {}]
  %s2 = inlined_call_operand.vmem [shape: f32[1,64], index: 2, kind: input, shape index: {}]
  %s3 = inlined_call_operand.vmem [shape: f32[64,32], index: 3, kind: input, shape index: {}]
  %s4 = inlined_call_operand.vmem [shape: f32[1,32], index: 4, kind: input, shape index: {}]
  %s5 = inlined_call_operand.hbm [shape: f32[16,32], index: 5, kind: output, shape index: {}]
  %s6 = sld [smem:[#allocation0]]
  $region30: #{tpu_custom_call.1} parent=0
    _
  %s8 = ssub.s32 1, %s6
  %s9 = scalar_select 0, %s8, %s6
  $region1: #{tpu_custom_call.1} parent=0
    #allocation2 [shape = 'u8[8192]{0}', space=vmem, size = 0x2000, scoped, tag = 'output window, operand 0, single buffered']
    #allocation3 [shape = 's32[1]{0}', space=sflag, size = 0x4, scoped, tag = 'scoped memory for tpu_custom_call.1']
    %10 = vsyncpa [#allocation3], 0
    // Predicated region
    $region2: #{tpu_custom_call.1} parent=1 // pred_check
      _
    $region3: #{tpu_custom_call.1} parent=1 // pred_check_branch
      %12 = sbr.rel (0) target = $region5
    $region4: #{tpu_custom_call.1} parent=1 // pred_region
      _
    $region5: #{tpu_custom_call.1} parent=1 // pred_fallthru
      _
    // Predicated region
    $region6: #{tpu_custom_call.1} parent=1 // pred_check
      _
    $region7: #{tpu_custom_call.1} parent=1 // pred_check_branch
      %14 = sbr.rel (0) target = $region9
    $region8: #{tpu_custom_call.1} parent=1 // pred_region
      _
    $region9: #{tpu_custom_call.1} parent=1 // pred_fallthru
      _
    // Predicated region
    $region10: #{tpu_custom_call.1} parent=1 // pred_check
      _
    $region11: #{tpu_custom_call.1} parent=1 // pred_check_branch
      %16 = sbr.rel (0) target = $region13
    $region12: #{tpu_custom_call.1} parent=1 // pred_region
      _
    $region13: #{tpu_custom_call.1} parent=1 // pred_fallthru
      _
    // Predicated region
    $region14: #{tpu_custom_call.1} parent=1 // pred_check
      _
    $region15: #{tpu_custom_call.1} parent=1 // pred_check_branch
      %18 = sbr.rel (0) target = $region17
    $region16: #{tpu_custom_call.1} parent=1 // pred_region
      _
    $region17: #{tpu_custom_call.1} parent=1 // pred_fallthru
      _
    // Predicated region
    $region18: #{tpu_custom_call.1} parent=1 // pred_check
      _
    $region19: #{tpu_custom_call.1} parent=1 // pred_check_branch
      %20 = sbr.rel (0) target = $region21
    $region20: #{tpu_custom_call.1} parent=1 // pred_region
      _
    $region21: #{tpu_custom_call.1} parent=1 // pred_fallthru
      _
    %v21 = vld [vmem:[%s0] sm:$0xff]
    %v22 = vld [vmem:[%s0 + $0x8] sm:$0xff]
    %v23 = vld [vmem:[%s1] sm:$0xff]
    %v24 = vld [vmem:[%s1 + $0x8] sm:$0xff]
    %v25 = vld [vmem:[%s1 + $0x10] sm:$0xff]
    %v26 = vld [vmem:[%s1 + $0x18] sm:$0xff]
    %v27 = vld [vmem:[%s2] sm:$0x1]
    %v29 = vperm.slane %v27, 0
    %vm31 = vcmask 261120
    %v33 = vsel %vm31, %v21, 0
    %v36 = vsel %vm31, %v22, 0
    %38 = vmatpush.msra.mxu0 0.0
    %39 = vmatpush.msra.mxu0 0.0
    %40 = vmatpush.msra.mxu0 0.0
    %41 = vmatpush.msra.mxu0 0.0
    %42 = vmatpush.msra.mxu0 0.0
    %43 = vmatpush.msra.mxu0 0.0
    %44 = vmatpush.msra.mxu0 0.0
    %45 = vmatpush.msra.mxu0 0.0
    %46 = vmatpush.msra.mxu0 0.0
    %47 = vmatpush.msra.mxu0 0.0
    %48 = vmatpush.msra.mxu0 0.0
    %49 = vmatpush.msra.mxu0 0.0
    %50 = vmatpush.msra.mxu0 %v26
    %51 = vmatpush.msra.mxu0 %v25
    %52 = vmatpush.msra.mxu0 %v24
    %53 = vmatpush.msra.mxu0 %v23
    %54 = vmatmul.f32.gmra.mxu0 %v33
    %v55 = vpop.f32.mrf.mxu0
    %v56 = vadd.f32 %v29, %v55
    %57 = vmatmul.f32.gmra.mxu0 %v36
    %v58 = vpop.f32.mrf.mxu0
    %v59 = vadd.f32 %v29, %v58
    %60 = vdwg.mxu0
    %v61 = vmax.f32 %v56, 0.0
    %v62 = vmax.f32 %v59, 0.0
    %v63 = vld [vmem:[%s3] sm:$0xff]
    %v64 = vld [vmem:[%s3 + $0x8] sm:$0xff]
    %v65 = vld [vmem:[%s3 + $0x10] sm:$0xff]
    %v66 = vld [vmem:[%s3 + $0x18] sm:$0xff]
    %v67 = vld [vmem:[%s3 + $0x20] sm:$0xff]
    %v68 = vld [vmem:[%s3 + $0x28] sm:$0xff]
    %v69 = vld [vmem:[%s3 + $0x30] sm:$0xff]
    %v70 = vld [vmem:[%s3 + $0x38] sm:$0xff]
    %v71 = vld [vmem:[%s4] sm:$0x1]
    %v73 = vperm.slane %v71, 0
    %vm75 = vcmask 523264
    %v77 = vsel %vm75, %v61, 0
    %v80 = vsel %vm75, %v62, 0
    %82 = vmatpush.msra.mxu0 0.0
    %83 = vmatpush.msra.mxu0 0.0
    %84 = vmatpush.msra.mxu0 0.0
    %85 = vmatpush.msra.mxu0 0.0
    %86 = vmatpush.msra.mxu0 0.0
    %87 = vmatpush.msra.mxu0 0.0
    %88 = vmatpush.msra.mxu0 0.0
    %89 = vmatpush.msra.mxu0 0.0
    %90 = vmatpush.msra.mxu0 %v70
    %91 = vmatpush.msra.mxu0 %v69
    %92 = vmatpush.msra.mxu0 %v68
    %93 = vmatpush.msra.mxu0 %v67
    %94 = vmatpush.msra.mxu0 %v66
    %95 = vmatpush.msra.mxu0 %v65
    %96 = vmatpush.msra.mxu0 %v64
    %97 = vmatpush.msra.mxu0 %v63
    %98 = vmatmul.f32.gmra.mxu0 %v77
    %v99 = vpop.f32.mrf.mxu0
    %v100 = vadd.f32 %v73, %v99
    %101 = vmatmul.f32.gmra.mxu0 %v80
    %v102 = vpop.f32.mrf.mxu0
    %v103 = vadd.f32 %v73, %v102
    %104 = vdwg.mxu0
    %105 = vst.msk [vmem:[#allocation2] sm:$0xff] %vm31, %v100
    %106 = vst.msk [vmem:[#allocation2 + $0x8] sm:$0xff] %vm31, %v103
    // Predicated region
    $region22: #{tpu_custom_call.1} parent=1 // pred_check
      _
    $region23: #{tpu_custom_call.1} parent=1 // pred_check_branch
      %108 = sbr.rel (0) target = $region25
    $region24: #{tpu_custom_call.1} parent=1 // pred_region
      %110 = vsyncadd [#allocation3], 0
      %s111 = sshll.u32 [#allocation2], 4
      %s112 = int_to_ptr.vmem [resolvable:$true] %s111
      %s113 = sshll.u32 %s5, 4
      %s114 = int_to_ptr.hbm [resolvable:$true] %s113
      %119 = dma.vmem_to_hbm [thread:$0]  %s112, 256, %s114, [#allocation3], 128, 128, 8
    $region25: #{tpu_custom_call.1} parent=1 // pred_fallthru
      _
    // Predicated region
    $region26: #{tpu_custom_call.1} parent=1 // pred_check
      _
    $region27: #{tpu_custom_call.1} parent=1 // pred_check_branch
      %121 = sbr.rel (0) target = $region29
    $region28: #{tpu_custom_call.1} parent=1 // pred_region
      %123 = dma.done [#allocation3], 256
    $region29: #{tpu_custom_call.1} parent=1 // pred_fallthru
      _
    %124 = vsyncpa [#allocation3], 1

</llo_original>
